<compile_context>
chip_gen: v7x
topology: tpu7x:2x2x1
jax: 0.10.0
libtpu: 0.0.40
codegen_flags: <defaults>
</compile_context>

<pallas_src>
import jax
import jax.numpy as jnp
from jax.experimental import pallas as pl
from jax.experimental.pallas import tpu as pltpu


def _outconv_kernel(w_ref, b_ref, x_ref, o_ref):
    """One spatial tile: y[o] = sum_c w[o, c] * x[c] + b[o].

    w_ref : SMEM (Cout, Cin)        f32 scalar weights
    b_ref : SMEM (Cout,)            f32 scalar bias
    x_ref : VMEM (1, Cin,  TR, TL)  spatial tile (sublane x lane dense)
    o_ref : VMEM (1, Cout, TR, TL)
    """
    cin = x_ref.shape[1]
    cout = o_ref.shape[1]

    # Load each input-channel spatial block exactly once; accumulate in f32.
    xs = [x_ref[0, c, :, :].astype(jnp.float32) for c in range(cin)]

    for o in range(cout):
        acc = xs[0] * w_ref[o, 0]
        for c in range(1, cin):
            acc = acc + xs[c] * w_ref[o, c]
        # One dense (unmasked-lane) store per output channel; downcast at store.
        o_ref[0, o, :, :] = (acc + b_ref[o]).astype(o_ref.dtype)


def out_conv(x_nchw, weight, bias, *, vmem_budget_bytes=8 * 1024 * 1024):
    """OutConv.forward (nn.Conv2d(kernel_size=1)) via Pallas.

    x_nchw : (N, Cin, H, W)
    weight : (Cout, Cin, 1, 1)   (PyTorch Conv2d weight layout)
    bias   : (Cout,)
    returns: (N, Cout, H, W)
    """
    N, Cin, H, W = x_nchw.shape
    Cout = weight.shape[0]
    L = H * W
    itemsize = jnp.dtype(x_nchw.dtype).itemsize

    # Free reshapes only (no extra HBM transpose passes).
    w_mat = weight.reshape(Cout, Cin).astype(jnp.float32)
    b_vec = bias.reshape(Cout).astype(jnp.float32)

    # Spatial-tile sizing: keep in+out blocks (double-buffered) under budget,
    # with a cap so in-kernel f32 intermediates stay modest.
    per_elem = (Cin + Cout) * itemsize * 2
    max_elems = max(128, min(128 * 1024, vmem_budget_bytes // per_elem))

    if L % 128 == 0:
        # Dense path: spatial as (rows, 128) -> full sublane+lane utilization.
        R, LANE = L // 128, 128
        max_rows = max(8, max_elems // 128)
        if R <= max_rows:
            tr = R                                  # full dim (any size allowed)
        else:
            tr = max(8, (max_elems // 128) // 8 * 8)  # multiple of 8 sublanes
        tlane = LANE
    else:
        # Fallback: spatial entirely on the lane axis (row dim of size 1).
        R, LANE = 1, L
        tr = 1
        tlane = L if L <= max_elems else max(128, (max_elems // 128) * 128)

    x4 = x_nchw.reshape(N, Cin, R, LANE)   # free reshape (row-major contiguous)

    grid = (N, pl.cdiv(R, tr), pl.cdiv(LANE, tlane))

    out4 = pl.pallas_call(
        _outconv_kernel,
        out_shape=jax.ShapeDtypeStruct((N, Cout, R, LANE), x_nchw.dtype),
        grid_spec=pltpu.PrefetchScalarGridSpec(
            num_scalar_prefetch=0,
            grid=grid,
            in_specs=[
                pl.BlockSpec(memory_space=pltpu.MemorySpace.SMEM),     # weight
                pl.BlockSpec(memory_space=pltpu.MemorySpace.SMEM),     # bias
                pl.BlockSpec((1, Cin, tr, tlane),
                             lambda n, r, l: (n, 0, r, l)),            # x tile
            ],
            out_specs=pl.BlockSpec((1, Cout, tr, tlane),
                                   lambda n, r, l: (n, 0, r, l)),
        ),
        compiler_params=pltpu.CompilerParams(
            dimension_semantics=("parallel", "parallel", "parallel")),
    )(w_mat, b_vec, x4)

    return out4.reshape(N, Cout, H, W)


if __name__ == "__main__":
    # Shapes consistent with OutConv(in_channels=4, out_channels=3)
    N, Cin, H, W = 2, 4, 16, 16
    Cout = 3

    key = jax.random.PRNGKey(0)
    kx, kw, kb = jax.random.split(key, 3)

    x = jax.random.normal(kx, (N, Cin, H, W), dtype=jnp.float32)
    # Deterministic synthetic parameters (same shapes as nn.Conv2d(4, 3, 1))
    weight = jax.random.normal(kw, (Cout, Cin, 1, 1), dtype=jnp.float32) * 0.1
    bias = jax.random.normal(kb, (Cout,), dtype=jnp.float32) * 0.1

    y = out_conv(x, weight, bias)
    y = jax.block_until_ready(y)

    # Reference check in plain JAX (1x1 conv == channel contraction + bias)
    y_ref = jnp.einsum("nchw,oc->nohw", x, weight.reshape(Cout, Cin)) \
        + bias.reshape(1, Cout, 1, 1)
    assert y.shape == (N, Cout, H, W)
    assert jnp.allclose(y, y_ref, atol=1e-5, rtol=1e-5)

    print("KERNEL_OK")
</pallas_src>

<mosaic_0001>
module attributes {stable_mosaic.version = 11 : i64} {
  func.func @_outconv_kernel(%arg0: i32, %arg1: i32, %arg2: i32, %arg3: memref<3x4xf32, #tpu.memory_space<smem>>, %arg4: memref<3xf32, #tpu.memory_space<smem>>, %arg5: memref<1x4x2x128xf32, #tpu.memory_space<vmem>>, %arg6: memref<1x3x2x128xf32, #tpu.memory_space<vmem>>) attributes {dimension_semantics = [#tpu.dimension_semantics<parallel>, #tpu.dimension_semantics<parallel>, #tpu.dimension_semantics<parallel>], iteration_bounds = array<i64: 2, 1, 1>, scalar_prefetch = 0 : i64, scratch_operands = 0 : i64, tpu.core_type = #tpu.core_type<tc>, window_params = [{transform_indices = @transform_0, window_bounds = array<i64: 3, 4>}, {transform_indices = @transform_1, window_bounds = array<i64: 3>}, {transform_indices = @transform_2, window_bounds = array<i64: 1, 4, 2, 128>}, {transform_indices = @transform_3, window_bounds = array<i64: 1, 3, 2, 128>}]} {
    %c0 = arith.constant 0 : index
    %c0_0 = arith.constant 0 : index
    %c0_1 = arith.constant 0 : index
    %c0_2 = arith.constant 0 : index
    %0 = vector.load %arg5[%c0, %c0_0, %c0_1, %c0_2] : memref<1x4x2x128xf32, #tpu.memory_space<vmem>>, vector<1x1x2x128xf32>
    %1 = vector.shape_cast %0 : vector<1x1x2x128xf32> to vector<2x128xf32>
    %c0_3 = arith.constant 0 : index
    %c1 = arith.constant 1 : index
    %c0_4 = arith.constant 0 : index
    %c0_5 = arith.constant 0 : index
    %2 = vector.load %arg5[%c0_3, %c1, %c0_4, %c0_5] : memref<1x4x2x128xf32, #tpu.memory_space<vmem>>, vector<1x1x2x128xf32>
    %3 = vector.shape_cast %2 : vector<1x1x2x128xf32> to vector<2x128xf32>
    %c0_6 = arith.constant 0 : index
    %c2 = arith.constant 2 : index
    %c0_7 = arith.constant 0 : index
    %c0_8 = arith.constant 0 : index
    %4 = vector.load %arg5[%c0_6, %c2, %c0_7, %c0_8] : memref<1x4x2x128xf32, #tpu.memory_space<vmem>>, vector<1x1x2x128xf32>
    %5 = vector.shape_cast %4 : vector<1x1x2x128xf32> to vector<2x128xf32>
    %c0_9 = arith.constant 0 : index
    %c3 = arith.constant 3 : index
    %c0_10 = arith.constant 0 : index
    %c0_11 = arith.constant 0 : index
    %6 = vector.load %arg5[%c0_9, %c3, %c0_10, %c0_11] : memref<1x4x2x128xf32, #tpu.memory_space<vmem>>, vector<1x1x2x128xf32>
    %7 = vector.shape_cast %6 : vector<1x1x2x128xf32> to vector<2x128xf32>
    %c0_12 = arith.constant 0 : index
    %c0_13 = arith.constant 0 : index
    %8 = memref.load %arg3[%c0_12, %c0_13] : memref<3x4xf32, #tpu.memory_space<smem>>
    %9 = vector.broadcast %8 : f32 to vector<2x128xf32>
    %10 = arith.mulf %1, %9 : vector<2x128xf32>
    %c0_14 = arith.constant 0 : index
    %c1_15 = arith.constant 1 : index
    %11 = memref.load %arg3[%c0_14, %c1_15] : memref<3x4xf32, #tpu.memory_space<smem>>
    %12 = vector.broadcast %11 : f32 to vector<2x128xf32>
    %13 = arith.mulf %3, %12 : vector<2x128xf32>
    %14 = arith.addf %10, %13 : vector<2x128xf32>
    %c0_16 = arith.constant 0 : index
    %c2_17 = arith.constant 2 : index
    %15 = memref.load %arg3[%c0_16, %c2_17] : memref<3x4xf32, #tpu.memory_space<smem>>
    %16 = vector.broadcast %15 : f32 to vector<2x128xf32>
    %17 = arith.mulf %5, %16 : vector<2x128xf32>
    %18 = arith.addf %14, %17 : vector<2x128xf32>
    %c0_18 = arith.constant 0 : index
    %c3_19 = arith.constant 3 : index
    %19 = memref.load %arg3[%c0_18, %c3_19] : memref<3x4xf32, #tpu.memory_space<smem>>
    %20 = vector.broadcast %19 : f32 to vector<2x128xf32>
    %21 = arith.mulf %7, %20 : vector<2x128xf32>
    %22 = arith.addf %18, %21 : vector<2x128xf32>
    %c0_20 = arith.constant 0 : index
    %23 = memref.load %arg4[%c0_20] : memref<3xf32, #tpu.memory_space<smem>>
    %24 = vector.broadcast %23 : f32 to vector<2x128xf32>
    %25 = arith.addf %22, %24 : vector<2x128xf32>
    %c0_21 = arith.constant 0 : index
    %c0_22 = arith.constant 0 : index
    %c0_23 = arith.constant 0 : index
    %c0_24 = arith.constant 0 : index
    %26 = vector.load %arg6[%c0_21, %c0_22, %c0_23, %c0_24] : memref<1x3x2x128xf32, #tpu.memory_space<vmem>>, vector<1x1x2x128xf32>
    %27 = vector.shape_cast %26 : vector<1x1x2x128xf32> to vector<2x128xf32>
    %28 = vector.shape_cast %25 : vector<2x128xf32> to vector<1x1x2x128xf32>
    tpu.vector_store %arg6[%c0_21, %c0_22, %c0_23, %c0_24], %28 {strides = array<i32>} : memref<1x3x2x128xf32, #tpu.memory_space<vmem>>, vector<1x1x2x128xf32>,
    %c1_25 = arith.constant 1 : index
    %c0_26 = arith.constant 0 : index
    %29 = memref.load %arg3[%c1_25, %c0_26] : memref<3x4xf32, #tpu.memory_space<smem>>
    %30 = vector.broadcast %29 : f32 to vector<2x128xf32>
    %31 = arith.mulf %1, %30 : vector<2x128xf32>
    %c1_27 = arith.constant 1 : index
    %c1_28 = arith.constant 1 : index
    %32 = memref.load %arg3[%c1_27, %c1_28] : memref<3x4xf32, #tpu.memory_space<smem>>
    %33 = vector.broadcast %32 : f32 to vector<2x128xf32>
    %34 = arith.mulf %3, %33 : vector<2x128xf32>
    %35 = arith.addf %31, %34 : vector<2x128xf32>
    %c1_29 = arith.constant 1 : index
    %c2_30 = arith.constant 2 : index
    %36 = memref.load %arg3[%c1_29, %c2_30] : memref<3x4xf32, #tpu.memory_space<smem>>
    %37 = vector.broadcast %36 : f32 to vector<2x128xf32>
    %38 = arith.mulf %5, %37 : vector<2x128xf32>
    %39 = arith.addf %35, %38 : vector<2x128xf32>
    %c1_31 = arith.constant 1 : index
    %c3_32 = arith.constant 3 : index
    %40 = memref.load %arg3[%c1_31, %c3_32] : memref<3x4xf32, #tpu.memory_space<smem>>
    %41 = vector.broadcast %40 : f32 to vector<2x128xf32>
    %42 = arith.mulf %7, %41 : vector<2x128xf32>
    %43 = arith.addf %39, %42 : vector<2x128xf32>
    %c1_33 = arith.constant 1 : index
    %44 = memref.load %arg4[%c1_33] : memref<3xf32, #tpu.memory_space<smem>>
    %45 = vector.broadcast %44 : f32 to vector<2x128xf32>
    %46 = arith.addf %43, %45 : vector<2x128xf32>
    %c0_34 = arith.constant 0 : index
    %c1_35 = arith.constant 1 : index
    %c0_36 = arith.constant 0 : index
    %c0_37 = arith.constant 0 : index
    %47 = vector.load %arg6[%c0_34, %c1_35, %c0_36, %c0_37] : memref<1x3x2x128xf32, #tpu.memory_space<vmem>>, vector<1x1x2x128xf32>
    %48 = vector.shape_cast %47 : vector<1x1x2x128xf32> to vector<2x128xf32>
    %49 = vector.shape_cast %46 : vector<2x128xf32> to vector<1x1x2x128xf32>
    tpu.vector_store %arg6[%c0_34, %c1_35, %c0_36, %c0_37], %49 {strides = array<i32>} : memref<1x3x2x128xf32, #tpu.memory_space<vmem>>, vector<1x1x2x128xf32>,
    %c2_38 = arith.constant 2 : index
    %c0_39 = arith.constant 0 : index
    %50 = memref.load %arg3[%c2_38, %c0_39] : memref<3x4xf32, #tpu.memory_space<smem>>
    %51 = vector.broadcast %50 : f32 to vector<2x128xf32>
    %52 = arith.mulf %1, %51 : vector<2x128xf32>
    %c2_40 = arith.constant 2 : index
    %c1_41 = arith.constant 1 : index
    %53 = memref.load %arg3[%c2_40, %c1_41] : memref<3x4xf32, #tpu.memory_space<smem>>
    %54 = vector.broadcast %53 : f32 to vector<2x128xf32>
    %55 = arith.mulf %3, %54 : vector<2x128xf32>
    %56 = arith.addf %52, %55 : vector<2x128xf32>
    %c2_42 = arith.constant 2 : index
    %c2_43 = arith.constant 2 : index
    %57 = memref.load %arg3[%c2_42, %c2_43] : memref<3x4xf32, #tpu.memory_space<smem>>
    %58 = vector.broadcast %57 : f32 to vector<2x128xf32>
    %59 = arith.mulf %5, %58 : vector<2x128xf32>
    %60 = arith.addf %56, %59 : vector<2x128xf32>
    %c2_44 = arith.constant 2 : index
    %c3_45 = arith.constant 3 : index
    %61 = memref.load %arg3[%c2_44, %c3_45] : memref<3x4xf32, #tpu.memory_space<smem>>
    %62 = vector.broadcast %61 : f32 to vector<2x128xf32>
    %63 = arith.mulf %7, %62 : vector<2x128xf32>
    %64 = arith.addf %60, %63 : vector<2x128xf32>
    %c2_46 = arith.constant 2 : index
    %65 = memref.load %arg4[%c2_46] : memref<3xf32, #tpu.memory_space<smem>>
    %66 = vector.broadcast %65 : f32 to vector<2x128xf32>
    %67 = arith.addf %64, %66 : vector<2x128xf32>
    %c0_47 = arith.constant 0 : index
    %c2_48 = arith.constant 2 : index
    %c0_49 = arith.constant 0 : index
    %c0_50 = arith.constant 0 : index
    %68 = vector.load %arg6[%c0_47, %c2_48, %c0_49, %c0_50] : memref<1x3x2x128xf32, #tpu.memory_space<vmem>>, vector<1x1x2x128xf32>
    %69 = vector.shape_cast %68 : vector<1x1x2x128xf32> to vector<2x128xf32>
    %70 = vector.shape_cast %67 : vector<2x128xf32> to vector<1x1x2x128xf32>
    tpu.vector_store %arg6[%c0_47, %c2_48, %c0_49, %c0_50], %70 {strides = array<i32>} : memref<1x3x2x128xf32, #tpu.memory_space<vmem>>, vector<1x1x2x128xf32>,
    return
  }
  func.func @transform_0(%arg0: i32, %arg1: i32, %arg2: i32) -> (i32, i32) {
    %c0_i32 = arith.constant 0 : i32
    %c0_i32_0 = arith.constant 0 : i32
    %c0_i32_1 = arith.constant 0 : i32
    return %c0_i32, %c0_i32_0 : i32, i32
  }
  func.func @transform_1(%arg0: i32, %arg1: i32, %arg2: i32) -> i32 {
    %c0_i32 = arith.constant 0 : i32
    %c0_i32_0 = arith.constant 0 : i32
    return %c0_i32 : i32
  }
  func.func @transform_2(%arg0: i32, %arg1: i32, %arg2: i32) -> (i32, i32, i32, i32) {
    %c0_i32 = arith.constant 0 : i32
    %c0_i32_0 = arith.constant 0 : i32
    return %arg0, %c0_i32, %arg1, %arg2 : i32, i32, i32, i32
  }
  func.func @transform_3(%arg0: i32, %arg1: i32, %arg2: i32) -> (i32, i32, i32, i32) {
    %c0_i32 = arith.constant 0 : i32
    %c0_i32_0 = arith.constant 0 : i32
    return %arg0, %c0_i32, %arg1, %arg2 : i32, i32, i32, i32
  }
}

</mosaic_0001>

<llo_original>
// kernel: tpu_custom_call.1
$region0: #{tpu_custom_call.1}
  #allocation0 [shape = 'u32[]', space=smem, size = 0x4, offset = 0x4, fixed_abs, tag = 'smem constant byte address 0x4 - core index']
  #allocation1 [shape = 'u32[144,128]{1,0:T(1,128)}', space=vmem, size = 0x12000, scoped, tag = 'internal scratch']
  %s0 = inlined_call_operand.hbm [shape: f32[3,4], index: 0, kind: input, shape index: {}]
  %s1 = inlined_call_operand.vmem [shape: f32[3], index: 1, kind: input, shape index: {}]
  %s2 = inlined_call_operand.hbm [shape: f32[2,4,2,128], index: 2, kind: input, shape index: {}]
  %s3 = inlined_call_operand.hbm [shape: f32[2,3,2,128], index: 3, kind: output, shape index: {}]
  %s4 = sld [smem:[#allocation0]]
  $region57: #{tpu_custom_call.1} parent=0
    _
  %s6 = ssub.s32 1, %s4
  %s7 = scalar_select 0, %s6, %s4
  $region1: #{tpu_custom_call.1} parent=0
    #allocation2 [shape = 'u8[2048]{0}', space=smem, size = 0x800, scoped, tag = 'input window, operand 0, single buffered']
    #allocation3 [shape = 's32[2]{0}', space=sflag, size = 0x8, scoped, tag = 'scoped memory for tpu_custom_call.1']
    #allocation4 [shape = 's32[2]{0}', space=sflag, size = 0x8, scoped, tag = 'scoped memory for tpu_custom_call.1']
    #allocation5 [shape = 's32[2]{0}', space=sflag, size = 0x8, scoped, tag = 'scoped memory for tpu_custom_call.1']
    #allocation6 [shape = 's32[2]{0}', space=sflag, size = 0x8, scoped, tag = 'scoped memory for tpu_custom_call.1']
    #allocation7 [shape = 'u8[512]{0}', space=smem, size = 0x200, scoped, tag = 'input window, operand 1, single buffered']
    #allocation8 [shape = 'u8[8192]{0}', space=vmem, size = 0x2000, scoped, tag = 'input window, operand 2']
    #allocation9 [shape = 'u8[6144]{0}', space=vmem, size = 0x1800, scoped, tag = 'output window, operand 0']
    %8 = vsyncpa [#allocation5], 0
    %9 = vsyncpa [#allocation6], 0
    %10 = vsyncpa [#allocation3], 0
    %s11 = scalar_lea.sflag [#allocation3], 1
    %12 = vsyncpa %s11, 0
    %13 = vsyncpa [#allocation4], 0
    %s14 = scalar_lea.sflag [#allocation4], 1
    %15 = vsyncpa %s14, 0
    loop: start=0, step=1, limit=4
    $region2: #{tpu_custom_call.1} parent=1 // loop_pre_header
      _
    $region3: #{tpu_custom_call.1} parent=1 // loop_header
      %s17 = sphi 0, %s21
      %p18 = scmp.ge.s32.totalorder %s17, 4
      %s24 = sphi 0, %s43
      %s25 = sphi 0, %s39
      %s26 = sphi 0, %s35
      %s27 = sphi 0, %s24
      %s28 = sphi 0, %s25
      %s29 = sphi 0, %s26
      %s30 = sphi 0, %s27
      %s31 = sphi 0, %s28
      %s32 = sphi 0, %s29
      %s44 = sphi 0, %s44
      %s46 = sphi 0, %s44
      %s47 = sphi 0, %s46
      %s61 = sphi 0, %s47
      %s65 = sphi 0, %s65
      %s67 = sphi 0, %s65
      %s68 = sphi 0, %s67
      %s82 = sphi 0, %s68
      %s92 = sphi 0, %s94
      %s95 = sphi 0, %s92
      %s96 = sphi 0, %s95
      %s112 = sphi 0, %s96
      %s122 = sphi 0, %s124
      %s125 = sphi 0, %s122
      %s126 = sphi 0, %s125
      %s142 = sphi 0, %s126
    $region4: #{tpu_custom_call.1} parent=1 // loop_header_branch
      %20 = sbr.rel (%p18) target = $region8
    $region5: #{tpu_custom_call.1} parent=1 // loop_body
      %s22 = ssub.s32 %s17, 1
      %s23 = ssub.s32 %s17, 2
      %s33 = sadd.s32 1, %s26
      %p34 = scmp.ge.s32.totalorder %s33, 1
      %s35 = scalar_select %p34, 0, %s33
      %s36 = sadd.s32 1, %s25
      %s37 = scalar_select %p34, %s36, %s25
      %p38 = scmp.ge.s32.totalorder %s37, 1
      %s39 = scalar_select %p38, 0, %s37
      %s40 = sadd.s32 1, %s24
      %s41 = scalar_select %p38, %s40, %s24
      %p42 = scmp.ge.s32.totalorder %s41, 2
      %s43 = scalar_select %p42, 0, %s41
      %s45 = sadd.s32 %s44, 1
      %p48 = scmp.eq.s32.totalorder %s17, 1
      %p49 = scmp.ne.s32.totalorder %s44, %s46
      %p50 = scmp.eq.s32.totalorder %s17, 0
      %p51 = por %p49, %p50
      %p52 = scmp.ne.s32.totalorder %s44, %s46
      %p53 = scmp.eq.s32.totalorder %s22, 1
      %p54 = por %p52, %p53
      %p55 = scmp.ne.s32.totalorder %s46, %s47
      %p56 = scmp.eq.s32.totalorder %s22, 0
      %p57 = por %p55, %p56
      %p58 = scmp.ne.s32.totalorder %s46, %s47
      %p59 = scmp.eq.s32.totalorder %s23, 1
      %p60 = por %p58, %p59
      %p62 = scmp.ne.s32.totalorder %s47, %s61
      %p63 = scmp.eq.s32.totalorder %s23, 0
      %p64 = por %p62, %p63
      %s66 = sadd.s32 %s65, 1
      %p69 = scmp.eq.s32.totalorder %s17, 1
      %p70 = scmp.ne.s32.totalorder %s65, %s67
      %p71 = scmp.eq.s32.totalorder %s17, 0
      %p72 = por %p70, %p71
      %p73 = scmp.ne.s32.totalorder %s65, %s67
      %p74 = scmp.eq.s32.totalorder %s22, 1
      %p75 = por %p73, %p74
      %p76 = scmp.ne.s32.totalorder %s67, %s68
      %p77 = scmp.eq.s32.totalorder %s22, 0
      %p78 = por %p76, %p77
      %p79 = scmp.ne.s32.totalorder %s67, %s68
      %p80 = scmp.eq.s32.totalorder %s23, 1
      %p81 = por %p79, %p80
      %p83 = scmp.ne.s32.totalorder %s68, %s82
      %p84 = scmp.eq.s32.totalorder %s23, 0
      %p85 = por %p83, %p84
      %s86 = ssub.s32 %s24, %s43
      %s87 = ssub.s32 %s25, %s39
      %s88 = sor.u32 %s86, %s87
      %s89 = ssub.s32 %s26, %s35
      %s90 = sor.u32 %s88, %s89
      %p91 = scmp.eq.s32.totalorder %s90, 0
      %s93 = sadd.s32 %s92, 1
      %s94 = scalar_select %p91, %s92, %s93
      %p97 = pneg %p91
      %p98 = scmp.eq.s32.totalorder %s17, 1
      %p99 = por %p97, %p98
      %p100 = scmp.ne.s32.totalorder %s92, %s95
      %p101 = scmp.eq.s32.totalorder %s17, 0
      %p102 = por %p100, %p101
      %p103 = scmp.ne.s32.totalorder %s92, %s95
      %p104 = scmp.eq.s32.totalorder %s22, 1
      %p105 = por %p103, %p104
      %p106 = scmp.ne.s32.totalorder %s95, %s96
      %p107 = scmp.eq.s32.totalorder %s22, 0
      %p108 = por %p106, %p107
      %p109 = scmp.ne.s32.totalorder %s95, %s96
      %p110 = scmp.eq.s32.totalorder %s23, 1
      %p111 = por %p109, %p110
      %p113 = scmp.ne.s32.totalorder %s96, %s112
      %p114 = scmp.eq.s32.totalorder %s23, 0
      %p115 = por %p113, %p114
      %s116 = ssub.s32 %s24, %s43
      %s117 = ssub.s32 %s25, %s39
      %s118 = sor.u32 %s116, %s117
      %s119 = ssub.s32 %s26, %s35
      %s120 = sor.u32 %s118, %s119
      %p121 = scmp.eq.s32.totalorder %s120, 0
      %s123 = sadd.s32 %s122, 1
      %s124 = scalar_select %p121, %s122, %s123
      %p127 = pneg %p121
      %p128 = scmp.eq.s32.totalorder %s17, 1
      %p129 = por %p127, %p128
      %p130 = scmp.ne.s32.totalorder %s122, %s125
      %p131 = scmp.eq.s32.totalorder %s17, 0
      %p132 = por %p130, %p131
      %p133 = scmp.ne.s32.totalorder %s122, %s125
      %p134 = scmp.eq.s32.totalorder %s22, 1
      %p135 = por %p133, %p134
      %p136 = scmp.ne.s32.totalorder %s125, %s126
      %p137 = scmp.eq.s32.totalorder %s22, 0
      %p138 = por %p136, %p137
      %p139 = scmp.ne.s32.totalorder %s125, %s126
      %p140 = scmp.eq.s32.totalorder %s23, 1
      %p141 = por %p139, %p140
      %p143 = scmp.ne.s32.totalorder %s126, %s142
      %p144 = scmp.eq.s32.totalorder %s23, 0
      %p145 = por %p143, %p144
      %p146 = scmp.le.s32.totalorder 1, %s17
      %p147 = scmp.lt.s32.totalorder %s17, 3
      %p148 = pnand %p146, %p147
      %p149 = pneg %p148
      // Predicated region
      $region9: #{tpu_custom_call.1} parent=5 // pred_check
        _
      $region10: #{tpu_custom_call.1} parent=5 // pred_check_branch
        %151 = sbr.rel (%p148) target = $region12
      $region11: #{tpu_custom_call.1} parent=5 // pred_region
        %s152 = ssub.s32 %s17, 1
        // Predicated region
        $region13: #{tpu_custom_call.1} parent=11 // pred_check
          %p153 = pneg %p57
        $region14: #{tpu_custom_call.1} parent=11 // pred_check_branch
          %155 = sbr.rel (%p153) target = $region16
        $region15: #{tpu_custom_call.1} parent=11 // pred_region
          %s157 = ssub.s32 64, 64
          %158 = vsyncadd [#allocation5], %s157
          %161 = dma.hbm_to_smem %s0, 64, [#allocation2], [#allocation5]
        $region16: #{tpu_custom_call.1} parent=11 // pred_fallthru
          _
        // Predicated region
        $region17: #{tpu_custom_call.1} parent=11 // pred_check
          %p162 = pneg %p78
        $region18: #{tpu_custom_call.1} parent=11 // pred_check_branch
          %164 = sbr.rel (%p162) target = $region20
        $region19: #{tpu_custom_call.1} parent=11 // pred_region
          %s166 = ssub.s32 16, 16
          %167 = vsyncadd [#allocation6], %s166
          %s169 = sshll.u32 %s1, 4
          %s170 = int_to_ptr.vmem [resolvable:$true] %s169
          %172 = dma.vmem_to_smem %s170, 16, [#allocation7], [#allocation6]
        $region20: #{tpu_custom_call.1} parent=11 // pred_fallthru
          _
      $region12: #{tpu_custom_call.1} parent=5 // pred_fallthru
        _
      %p173 = scmp.lt.s32.totalorder %s17, 2
      // Predicated region
      $region21: #{tpu_custom_call.1} parent=5 // pred_check
        %p174 = pneg %p173
      $region22: #{tpu_custom_call.1} parent=5 // pred_check_branch
        %176 = sbr.rel (%p174) target = $region24
      $region23: #{tpu_custom_call.1} parent=5 // pred_region
        // Predicated region
        $region25: #{tpu_custom_call.1} parent=23 // pred_check
          %p177 = pneg %p102
        $region26: #{tpu_custom_call.1} parent=23 // pred_check_branch
          %179 = sbr.rel (%p177) target = $region28
        $region27: #{tpu_custom_call.1} parent=23 // pred_region
          %s180 = sand.u32 %s92, 1
          %s181 = scalar_lea.sflag [#allocation3], %s180
          %s182 = sand.u32 %s92, 1
          %s183 = smul.addr %s182, 8
          %s184 = scalar_lea.vmem [#allocation8], %s183
          %s186 = ssub.s32 128, 128
          %187 = vsyncadd %s181, %s186
          %s188 = sadd.s32 %s26, %s25
          %s189 = smul.addr %s24, 4
          %s190 = sadd.s32 %s188, %s189
          %s191 = smul.addr %s190, 32
          %s192 = scalar_lea.hbm %s2, %s191
          %s193 = sshll.u32 %s184, 4
          %s194 = int_to_ptr.vmem [resolvable:$true] %s193
          %199 = dma.hbm_to_vmem [thread:$0]  %s192, 128, %s194, %s181, 32, 32, 2
        $region28: #{tpu_custom_call.1} parent=23 // pred_fallthru
          _
      $region24: #{tpu_custom_call.1} parent=5 // pred_fallthru
        _
      %p200 = scmp.le.s32.totalorder 1, %s17
      %p201 = scmp.lt.s32.totalorder %s17, 3
      %p202 = pnand %p200, %p201
      %p203 = pneg %p202
      // Predicated region
      $region29: #{tpu_custom_call.1} parent=5 // pred_check
        _
      $region30: #{tpu_custom_call.1} parent=5 // pred_check_branch
        %205 = sbr.rel (%p202) target = $region32
      $region31: #{tpu_custom_call.1} parent=5 // pred_region
        %s206 = ssub.s32 %s17, 1
        // Predicated region
        $region33: #{tpu_custom_call.1} parent=31 // pred_check
          %p207 = pneg %p57
        $region34: #{tpu_custom_call.1} parent=31 // pred_check_branch
          %209 = sbr.rel (%p207) target = $region36
        $region35: #{tpu_custom_call.1} parent=31 // pred_region
          %210 = dma.done [#allocation5], 64
        $region36: #{tpu_custom_call.1} parent=31 // pred_fallthru
          _
        // Predicated region
        $region37: #{tpu_custom_call.1} parent=31 // pred_check
          %p211 = pneg %p78
        $region38: #{tpu_custom_call.1} parent=31 // pred_check_branch
          %213 = sbr.rel (%p211) target = $region40
        $region39: #{tpu_custom_call.1} parent=31 // pred_region
          %214 = dma.done [#allocation6], 16
        $region40: #{tpu_custom_call.1} parent=31 // pred_fallthru
          _
        %s215 = sand.u32 %s95, 1
        %s216 = scalar_lea.sflag [#allocation3], %s215
        %s217 = sand.u32 %s95, 1
        %s218 = smul.addr %s217, 8
        %s219 = scalar_lea.vmem [#allocation8], %s218
        // Predicated region
        $region41: #{tpu_custom_call.1} parent=31 // pred_check
          %p220 = pneg %p108
        $region42: #{tpu_custom_call.1} parent=31 // pred_check_branch
          %222 = sbr.rel (%p220) target = $region44
        $region43: #{tpu_custom_call.1} parent=31 // pred_region
          %223 = dma.done %s216, 128
        $region44: #{tpu_custom_call.1} parent=31 // pred_fallthru
          _
        %224 = sfence
        %p225 = pneg %p57
        %p226 = pneg %p54
        %p227 = pneg %p78
        %p228 = pneg %p75
        %s229 = sand.u32 %s95, 1
        %s230 = scalar_lea.sflag [#allocation3], %s229
        %s231 = sand.u32 %s95, 1
        %s232 = smul.addr %s231, 8
        %s233 = scalar_lea.vmem [#allocation8], %s232
        %p234 = pneg %p108
        %p235 = pneg %p105
        %p236 = pneg %p138
        %p237 = pneg %p135
        %s238 = sand.u32 %s125, 1
        %s239 = scalar_lea.sflag [#allocation4], %s238
        %s240 = sand.u32 %s125, 1
        %s241 = smul.addr %s240, 6
        %s242 = scalar_lea.vmem [#allocation9], %s241
        %v243 = vld [vmem:[%s219] sm:$0x3]
        %s244 = scalar_lea.vmem %s219, 2 [#allocation8]
        %v245 = vld [vmem:[%s244] sm:$0x3]
        %s246 = scalar_lea.vmem %s219, 4 [#allocation8]
        %v247 = vld [vmem:[%s246] sm:$0x3]
        %s248 = scalar_lea.vmem %s219, 6 [#allocation8]
        %v249 = vld [vmem:[%s248] sm:$0x3]
        %s250 = sld [smem:[#allocation2]]
        %v251 = vstv %s250
        %v252 = vmul.f32 %v243, %v251
        %s253 = sld [smem:[#allocation2 + $0x1]]
        %v254 = vstv %s253
        %v255 = vmul.f32 %v245, %v254
        %v256 = vadd.f32 %v252, %v255
        %s257 = sld [smem:[#allocation2 + $0x2]]
        %v258 = vstv %s257
        %v259 = vmul.f32 %v247, %v258
        %v260 = vadd.f32 %v256, %v259
        %s261 = sld [smem:[#allocation2 + $0x3]]
        %v262 = vstv %s261
        %v263 = vmul.f32 %v249, %v262
        %v264 = vadd.f32 %v260, %v263
        %s265 = sld [smem:[#allocation7]]
        %v266 = vstv %s265
        %v267 = vadd.f32 %v264, %v266
        %268 = vst [vmem:[%s242] sm:$0x3] %v267
        %s269 = sld [smem:[#allocation2 + $0x80]]
        %v270 = vstv %s269
        %v271 = vmul.f32 %v243, %v270
        %s272 = sld [smem:[#allocation2 + $0x81]]
        %v273 = vstv %s272
        %v274 = vmul.f32 %v245, %v273
        %v275 = vadd.f32 %v271, %v274
        %s276 = sld [smem:[#allocation2 + $0x82]]
        %v277 = vstv %s276
        %v278 = vmul.f32 %v247, %v277
        %v279 = vadd.f32 %v275, %v278
        %s280 = sld [smem:[#allocation2 + $0x83]]
        %v281 = vstv %s280
        %v282 = vmul.f32 %v249, %v281
        %v283 = vadd.f32 %v279, %v282
        %s284 = sld [smem:[#allocation7 + $0x1]]
        %v285 = vstv %s284
        %v286 = vadd.f32 %v283, %v285
        %s287 = scalar_lea.vmem %s242, 2 [#allocation9]
        %288 = vst [vmem:[%s287] sm:$0x3] %v286
        %s289 = sld [smem:[#allocation2 + $0x100]]
        %v290 = vstv %s289
        %v291 = vmul.f32 %v243, %v290
        %s292 = sld [smem:[#allocation2 + $0x101]]
        %v293 = vstv %s292
        %v294 = vmul.f32 %v245, %v293
        %v295 = vadd.f32 %v291, %v294
        %s296 = sld [smem:[#allocation2 + $0x102]]
        %v297 = vstv %s296
        %v298 = vmul.f32 %v247, %v297
        %v299 = vadd.f32 %v295, %v298
        %s300 = sld [smem:[#allocation2 + $0x103]]
        %v301 = vstv %s300
        %v302 = vmul.f32 %v249, %v301
        %v303 = vadd.f32 %v299, %v302
        %s304 = sld [smem:[#allocation7 + $0x2]]
        %v305 = vstv %s304
        %v306 = vadd.f32 %v303, %v305
        %s307 = scalar_lea.vmem %s242, 4 [#allocation9]
        %308 = vst [vmem:[%s307] sm:$0x3] %v306
        %s309 = sand.u32 %s125, 1
        %s310 = scalar_lea.sflag [#allocation4], %s309
        %s311 = sand.u32 %s125, 1
        %s312 = smul.addr %s311, 6
        %s313 = scalar_lea.vmem [#allocation9], %s312
        // Predicated region
        $region45: #{tpu_custom_call.1} parent=31 // pred_check
          %p314 = pneg %p135
        $region46: #{tpu_custom_call.1} parent=31 // pred_check_branch
          %316 = sbr.rel (%p314) target = $region48
        $region47: #{tpu_custom_call.1} parent=31 // pred_region
          %s318 = ssub.s32 96, 96
          %319 = vsyncadd %s310, %s318
          %s320 = sadd.s32 %s29, %s28
          %s321 = smul.addr %s27, 3
          %s322 = sadd.s32 %s320, %s321
          %s323 = smul.addr %s322, 32
          %s324 = scalar_lea.hbm %s3, %s323
          %s325 = sshll.u32 %s313, 4
          %s326 = int_to_ptr.vmem [resolvable:$true] %s325
          %331 = dma.vmem_to_hbm [thread:$0]  %s326, 96, %s324, %s310, 32, 32, 2
        $region48: #{tpu_custom_call.1} parent=31 // pred_fallthru
          _
      $region32: #{tpu_custom_call.1} parent=5 // pred_fallthru
        _
      %p332 = scmp.le.s32.totalorder 2, %s17
      // Predicated region
      $region49: #{tpu_custom_call.1} parent=5 // pred_check
        %p333 = pneg %p332
      $region50: #{tpu_custom_call.1} parent=5 // pred_check_branch
        %335 = sbr.rel (%p333) target = $region52
      $region51: #{tpu_custom_call.1} parent=5 // pred_region
        %s336 = ssub.s32 %s17, 2
        // Predicated region
        $region53: #{tpu_custom_call.1} parent=51 // pred_check
          %p337 = pneg %p141
        $region54: #{tpu_custom_call.1} parent=51 // pred_check_branch
          %339 = sbr.rel (%p337) target = $region56
        $region55: #{tpu_custom_call.1} parent=51 // pred_region
          %s340 = sand.u32 %s126, 1
          %s341 = scalar_lea.sflag [#allocation4], %s340
          %s342 = sand.u32 %s126, 1
          %s343 = smul.addr %s342, 6
          %s344 = scalar_lea.vmem [#allocation9], %s343
          %345 = dma.done %s341, 96
        $region56: #{tpu_custom_call.1} parent=51 // pred_fallthru
          _
      $region52: #{tpu_custom_call.1} parent=5 // pred_fallthru
        _
    $region6: #{tpu_custom_call.1} parent=1 // loop_footer
      %s21 = sadd.s32 1, %s17
    $region7: #{tpu_custom_call.1} parent=1 // loop_footer_branch
      %16 = sbr.rel target = $region3
    $region8: #{tpu_custom_call.1} parent=1 // loop_exit
      _
    %346 = vsyncpa [#allocation3], 1
    %s347 = scalar_lea.sflag [#allocation3], 1
    %348 = vsyncpa %s347, 1
    %349 = vsyncpa [#allocation4], 1
    %s350 = scalar_lea.sflag [#allocation4], 1
    %351 = vsyncpa %s350, 1
    %352 = vsyncpa [#allocation5], 1
    %s353 = scalar_lea.sflag [#allocation5], 1
    %354 = vsyncpa %s353, 1
    %355 = vsyncpa [#allocation6], 1
    %s356 = scalar_lea.sflag [#allocation6], 1
    %357 = vsyncpa %s356, 1

</llo_original>
